<compile_context>
chip_gen: v6e
topology: v6e:2x2x1
jax: 0.10.0
libtpu: 0.0.40
codegen_flags: <defaults>
</compile_context>

<pallas_src>
import jax
import jax.numpy as jnp
from jax.experimental import pallas as pl
from jax.experimental.pallas import tpu as pltpu


def _round_up(a, b):
    return ((a + b - 1) // b) * b


def _vmem_capacity_bytes():
    try:
        return int(pltpu.get_tpu_info().vmem_capacity_bytes)
    except Exception:
        return 64 << 20  # conservative (v7x per-TC VMEM)


def _triplet_wrt_local_kernel(x1_ref, sq1_ref, t1_ref, x2t_ref, sq2_ref,
                              t2_ref, valid_ref, out_ref,
                              m_ap, z_ap, s_ap, m_an, z_an, s_an):
    """One (row-tile, gallery-tile) step with online masked softmax.

    x1_ref   : (TILE_N, D_pad)  f32  anchor rows (constant across m steps)
    sq1_ref  : (TILE_N, 1)      f32  precomputed ||x1||^2
    t1_ref   : (TILE_N, 1)      i32  anchor labels
    x2t_ref  : (D_pad, TILE_M)  f32  gallery block, pre-transposed (MXU (K,N))
    sq2_ref  : (1, TILE_M)      f32  precomputed ||x2||^2, lane-dense
    t2_ref   : (1, TILE_M)      i32  gallery labels
    valid_ref: (1, TILE_M)      f32  1.0 for real columns, 0.0 for padding
    out_ref  : (TILE_N, 1)      f32  per-anchor soft-margin loss
    scratch  : six (TILE_N, 1)  f32  online-softmax state (max / denom / sum
                                     for the positive and negative branches)
    """
    m_idx = pl.program_id(1)

    @pl.when(m_idx == 0)
    def _():
        # Running max init of 0.0 is exact here: all candidate values already
        # include masked zeros, so the reference max is always >= 0.
        m_ap[...] = jnp.zeros_like(m_ap)
        z_ap[...] = jnp.zeros_like(z_ap)
        s_ap[...] = jnp.zeros_like(s_ap)
        m_an[...] = jnp.zeros_like(m_an)
        z_an[...] = jnp.zeros_like(z_an)
        s_an[...] = jnp.zeros_like(s_an)

    # ---- pairwise distances: sqrt(clamp(||a||^2 + ||b||^2 - 2 a.b, 1e-12)) --
    # Fold the -2 into the small (TILE_N, D) operand instead of scaling the
    # (TILE_N, TILE_M) cross matrix (VALU saving since M >> D typically).
    x1m = x1_ref[...] * (-2.0)
    cross = jnp.dot(x1m, x2t_ref[...], preferred_element_type=jnp.float32)
    dist = jnp.sqrt(jnp.maximum(sq1_ref[...] + sq2_ref[...] + cross, 1e-12))

    # ---- label / padding masks ----
    valid = valid_ref[...]
    eq = (t1_ref[...] == t2_ref[...]).astype(jnp.float32)
    is_pos = eq * valid
    is_neg = valid - is_pos            # == (1 - eq) * valid, one VPU op less

    dist_ap = dist * is_pos
    dist_an = dist * is_neg
    neg_dan = -dist_an

    # ---- online masked softmax, positive branch (softmax of dist_ap) ----
    # NOTE: keep the masked form exp(dist_ap - max)*is_pos; using unmasked
    # dist here would produce inf*0 NaNs at masked entries.
    mp_new = jnp.maximum(m_ap[...], jnp.max(dist_ap, axis=1, keepdims=True))
    a_p = jnp.exp(m_ap[...] - mp_new)
    e_p = jnp.exp(dist_ap - mp_new) * is_pos
    z_ap[...] = a_p * z_ap[...] + jnp.sum(e_p, axis=1, keepdims=True)
    s_ap[...] = a_p * s_ap[...] + jnp.sum(dist_ap * e_p, axis=1, keepdims=True)
    m_ap[...] = mp_new

    # ---- online masked softmax, negative branch (softmax of -dist_an) ----
    mn_new = jnp.maximum(m_an[...], jnp.max(neg_dan, axis=1, keepdims=True))
    a_n = jnp.exp(m_an[...] - mn_new)
    e_n = jnp.exp(neg_dan - mn_new) * is_neg
    z_an[...] = a_n * z_an[...] + jnp.sum(e_n, axis=1, keepdims=True)
    s_an[...] = a_n * s_an[...] + jnp.sum(dist_an * e_n, axis=1, keepdims=True)
    m_an[...] = mn_new

    # ---- finalize: SoftMarginLoss with y = +1, numerically stable ----
    @pl.when(m_idx == pl.num_programs(1) - 1)
    def _():
        furthest_positive = s_ap[...] / (z_ap[...] + 1e-6)
        closest_negative = s_an[...] / (z_an[...] + 1e-6)
        z = furthest_positive - closest_negative       # = -(cn - fp)
        out_ref[...] = jnp.maximum(z, 0.0) + jnp.log1p(jnp.exp(-jnp.abs(z)))


def triplet_loss_wrt_local(inputs1, inputs2, targets1, targets2,
                           normalize_feature=False, tile_n=None, tile_m=None):
    """JAX/Pallas equivalent of TripletLoss_WRT_local.forward."""
    x1 = inputs1.astype(jnp.float32)
    x2 = inputs2.astype(jnp.float32)
    if normalize_feature:
        x1 = x1 / (jnp.linalg.norm(x1, axis=-1, keepdims=True) + 1e-12)
        x2 = x2 / (jnp.linalg.norm(x2, axis=-1, keepdims=True) + 1e-12)

    N, D = x1.shape
    M, _ = x2.shape

    # ---- generation-aware sizing ----
    vmem_cap = _vmem_capacity_bytes()
    small_vmem = vmem_cap <= (96 << 20)        # v7x-class: 64 MiB/TC, 2 TCs
    d_pad = _round_up(max(D, 1), 128)

    if tile_n is None:
        tile_n = 128 if small_vmem else 256    # bigger row tile on v5e/v6e
    tile_n = max(8, min(tile_n, _round_up(max(N, 1), 8)))
    if small_vmem and N > 8:
        # Guarantee >= 2 row tiles so ("parallel", ...) shards across both TCs.
        tile_n = min(tile_n, _round_up(pl.cdiv(N, 2), 8))

    if tile_m is None:
        tile_m = 512
    tile_m = max(128, min(tile_m, _round_up(max(M, 1), 128)))

    def vmem_estimate(tn, tm):
        def blk(r, c):  # sublane/lane-padded f32 buffer size
            return _round_up(r, 8) * _round_up(c, 128) * 4
        return (2 * blk(tn, d_pad)          # x1 tile (double-buffered)
                + 4 * blk(tn, 1)            # sq1 + t1
                + 2 * blk(d_pad, tm)        # x2^T tile (double-buffered)
                + 6 * blk(1, tm)            # sq2 / t2 / valid
                + 2 * blk(tn, 1)            # output tile
                + 6 * blk(tn, 1)            # online-softmax scratch
                + 8 * blk(tn, tm))          # live (tn, tm) intermediates

    budget = vmem_cap - (8 << 20)           # leave headroom for compiler scratch
    while vmem_estimate(tile_n, tile_m) > budget and tile_m > 128:
        tile_m = max(128, (tile_m // 2) // 128 * 128)
    while vmem_estimate(tile_n, tile_m) > budget and tile_n > 8:
        tile_n = max(8, (tile_n // 2) // 8 * 8)

    n_pad = _round_up(max(N, 1), tile_n)
    m_pad = _round_up(max(M, 1), tile_m)

    # ---- pad + precompute (HBM-side, one-time) ----
    x1_p = jnp.zeros((n_pad, d_pad), jnp.float32).at[:N, :D].set(x1)
    x2_p = jnp.zeros((m_pad, d_pad), jnp.float32).at[:M, :D].set(x2)
    x2t_p = x2_p.T                                        # (d_pad, m_pad), MXU-natural
    sq1 = jnp.sum(x1_p * x1_p, axis=1, keepdims=True)     # (n_pad, 1)
    sq2 = jnp.sum(x2_p * x2_p, axis=1).reshape(1, m_pad)  # (1, m_pad) lane-dense
    t1_p = jnp.full((n_pad, 1), -1, jnp.int32).at[:N, 0].set(
        targets1.astype(jnp.int32).reshape(-1))
    t2_p = jnp.full((1, m_pad), -2, jnp.int32).at[0, :M].set(
        targets2.astype(jnp.int32).reshape(-1))
    valid = jnp.zeros((1, m_pad), jnp.float32).at[0, :M].set(1.0)

    grid = (n_pad // tile_n, m_pad // tile_m)
    vmem_limit = int(min(max(vmem_estimate(tile_n, tile_m), 32 << 20), budget))

    per_row = pl.pallas_call(
        _triplet_wrt_local_kernel,
        out_shape=jax.ShapeDtypeStruct((n_pad, 1), jnp.float32),
        grid_spec=pltpu.PrefetchScalarGridSpec(
            num_scalar_prefetch=0,
            grid=grid,
            in_specs=[
                pl.BlockSpec((tile_n, d_pad), lambda i, m: (i, 0)),   # x1 tile
                pl.BlockSpec((tile_n, 1), lambda i, m: (i, 0)),       # ||x1||^2
                pl.BlockSpec((tile_n, 1), lambda i, m: (i, 0)),       # t1
                pl.BlockSpec((d_pad, tile_m), lambda i, m: (0, m)),   # x2^T block
                pl.BlockSpec((1, tile_m), lambda i, m: (0, m)),       # ||x2||^2
                pl.BlockSpec((1, tile_m), lambda i, m: (0, m)),       # t2
                pl.BlockSpec((1, tile_m), lambda i, m: (0, m)),       # valid
            ],
            out_specs=pl.BlockSpec((tile_n, 1), lambda i, m: (i, 0)),
            scratch_shapes=[pltpu.VMEM((tile_n, 1), jnp.float32)] * 6,
        ),
        compiler_params=pltpu.CompilerParams(
            dimension_semantics=("parallel", "arbitrary"),
            vmem_limit_bytes=vmem_limit,
        ),
    )(x1_p, sq1, t1_p, x2t_p, sq2, t2_p, valid)

    # Padded rows excluded; the final mean over a tiny vector runs in XLA.
    return jnp.mean(per_row[:N, 0])


def _reference_jax(inputs1, inputs2, targets1, targets2):
    """Pure-JAX reference mirroring the PyTorch module, for verification."""
    x1 = inputs1.astype(jnp.float32)
    x2 = inputs2.astype(jnp.float32)
    sq1 = jnp.sum(x1 ** 2, axis=1, keepdims=True)
    sq2 = jnp.sum(x2 ** 2, axis=1, keepdims=True)
    dist = sq1 + sq2.T - 2.0 * (x1 @ x2.T)
    dist = jnp.sqrt(jnp.maximum(dist, 1e-12))
    is_pos = (targets1[:, None] == targets2[None, :]).astype(jnp.float32)
    is_neg = 1.0 - is_pos
    dist_ap = dist * is_pos
    dist_an = dist * is_neg

    def softmax_weights(d, mask):
        max_v = jnp.max(d * mask, axis=1, keepdims=True)
        diff = d - max_v
        z = jnp.sum(jnp.exp(diff) * mask, axis=1, keepdims=True) + 1e-6
        return jnp.exp(diff) * mask / z

    w_ap = softmax_weights(dist_ap, is_pos)
    w_an = softmax_weights(-dist_an, is_neg)
    fp = jnp.sum(dist_ap * w_ap, axis=1)
    cn = jnp.sum(dist_an * w_an, axis=1)
    x = cn - fp
    return jnp.mean(jax.nn.softplus(-x))   # stable log(1 + exp(-x))


if __name__ == "__main__":
    # Small, deterministic example: N = M = 8 embeddings of dim D = 32,
    # labels drawn from 4 classes so both positive and negative pairs exist.
    key = jax.random.PRNGKey(0)
    k1, k2, k3, k4 = jax.random.split(key, 4)
    N, M, D = 8, 8, 32
    inputs1 = jax.random.normal(k1, (N, D), dtype=jnp.float32)
    inputs2 = jax.random.normal(k2, (M, D), dtype=jnp.float32)
    targets1 = jax.random.randint(k3, (N,), 0, 4, dtype=jnp.int32)
    targets2 = jax.random.randint(k4, (M,), 0, 4, dtype=jnp.int32)

    loss = triplet_loss_wrt_local(inputs1, inputs2, targets1, targets2)
    loss = jax.block_until_ready(loss)

    ref = _reference_jax(inputs1, inputs2, targets1, targets2)
    assert jnp.allclose(loss, ref, rtol=1e-5, atol=1e-5), (loss, ref)

    print("KERNEL_OK")
</pallas_src>

<mosaic_0001>
module attributes {stable_mosaic.version = 11 : i64} {
  func.func @_triplet_wrt_local_kernel(%arg0: i32, %arg1: i32, %arg2: memref<8x128xf32, #tpu.memory_space<vmem>>, %arg3: memref<8x1xf32, #tpu.memory_space<vmem>>, %arg4: memref<8x1xi32, #tpu.memory_space<vmem>>, %arg5: memref<128x128xf32, #tpu.memory_space<vmem>>, %arg6: memref<1x128xf32, #tpu.memory_space<vmem>>, %arg7: memref<1x128xi32, #tpu.memory_space<vmem>>, %arg8: memref<1x128xf32, #tpu.memory_space<vmem>>, %arg9: memref<8x1xf32, #tpu.memory_space<vmem>>, %arg10: memref<8x1xf32, #tpu.memory_space<vmem>>, %arg11: memref<8x1xf32, #tpu.memory_space<vmem>>, %arg12: memref<8x1xf32, #tpu.memory_space<vmem>>, %arg13: memref<8x1xf32, #tpu.memory_space<vmem>>, %arg14: memref<8x1xf32, #tpu.memory_space<vmem>>, %arg15: memref<8x1xf32, #tpu.memory_space<vmem>>) attributes {dimension_semantics = [#tpu.dimension_semantics<parallel>, #tpu.dimension_semantics<arbitrary>], iteration_bounds = array<i64: 1, 1>, scalar_prefetch = 0 : i64, scratch_operands = 6 : i64, tpu.core_type = #tpu.core_type<tc>, window_params = [{transform_indices = @transform_0, window_bounds = array<i64: 8, 128>}, {transform_indices = @transform_1, window_bounds = array<i64: 8, 1>}, {transform_indices = @transform_2, window_bounds = array<i64: 8, 1>}, {transform_indices = @transform_3, window_bounds = array<i64: 128, 128>}, {transform_indices = @transform_4, window_bounds = array<i64: 1, 128>}, {transform_indices = @transform_5, window_bounds = array<i64: 1, 128>}, {transform_indices = @transform_6, window_bounds = array<i64: 1, 128>}, {transform_indices = @transform_7, window_bounds = array<i64: 8, 1>}]} {
    %c0_i32 = arith.constant 0 : i32
    %0 = arith.cmpi eq, %arg1, %c0_i32 : i32
    %1 = arith.extui %0 : i1 to i32
    %c0_i32_0 = arith.constant 0 : i32
    %2 = arith.cmpi ne, %1, %c0_i32_0 : i32
    scf.if %2 {
      %cst_53 = arith.constant 0.000000e+00 : f32
      %86 = vector.broadcast %cst_53 : f32 to vector<8x1xf32>
      %c0_54 = arith.constant 0 : index
      %c0_55 = arith.constant 0 : index
      %87 = vector.load %arg10[%c0_54, %c0_55] : memref<8x1xf32, #tpu.memory_space<vmem>>, vector<8x1xf32>
      tpu.vector_store %arg10[%c0_54, %c0_55], %86 {strides = array<i32>} : memref<8x1xf32, #tpu.memory_space<vmem>>, vector<8x1xf32>,
      %cst_56 = arith.constant 0.000000e+00 : f32
      %88 = vector.broadcast %cst_56 : f32 to vector<8x1xf32>
      %c0_57 = arith.constant 0 : index
      %c0_58 = arith.constant 0 : index
      %89 = vector.load %arg11[%c0_57, %c0_58] : memref<8x1xf32, #tpu.memory_space<vmem>>, vector<8x1xf32>
      tpu.vector_store %arg11[%c0_57, %c0_58], %88 {strides = array<i32>} : memref<8x1xf32, #tpu.memory_space<vmem>>, vector<8x1xf32>,
      %cst_59 = arith.constant 0.000000e+00 : f32
      %90 = vector.broadcast %cst_59 : f32 to vector<8x1xf32>
      %c0_60 = arith.constant 0 : index
      %c0_61 = arith.constant 0 : index
      %91 = vector.load %arg12[%c0_60, %c0_61] : memref<8x1xf32, #tpu.memory_space<vmem>>, vector<8x1xf32>
      tpu.vector_store %arg12[%c0_60, %c0_61], %90 {strides = array<i32>} : memref<8x1xf32, #tpu.memory_space<vmem>>, vector<8x1xf32>,
      %cst_62 = arith.constant 0.000000e+00 : f32
      %92 = vector.broadcast %cst_62 : f32 to vector<8x1xf32>
      %c0_63 = arith.constant 0 : index
      %c0_64 = arith.constant 0 : index
      %93 = vector.load %arg13[%c0_63, %c0_64] : memref<8x1xf32, #tpu.memory_space<vmem>>, vector<8x1xf32>
      tpu.vector_store %arg13[%c0_63, %c0_64], %92 {strides = array<i32>} : memref<8x1xf32, #tpu.memory_space<vmem>>, vector<8x1xf32>,
      %cst_65 = arith.constant 0.000000e+00 : f32
      %94 = vector.broadcast %cst_65 : f32 to vector<8x1xf32>
      %c0_66 = arith.constant 0 : index
      %c0_67 = arith.constant 0 : index
      %95 = vector.load %arg14[%c0_66, %c0_67] : memref<8x1xf32, #tpu.memory_space<vmem>>, vector<8x1xf32>
      tpu.vector_store %arg14[%c0_66, %c0_67], %94 {strides = array<i32>} : memref<8x1xf32, #tpu.memory_space<vmem>>, vector<8x1xf32>,
      %cst_68 = arith.constant 0.000000e+00 : f32
      %96 = vector.broadcast %cst_68 : f32 to vector<8x1xf32>
      %c0_69 = arith.constant 0 : index
      %c0_70 = arith.constant 0 : index
      %97 = vector.load %arg15[%c0_69, %c0_70] : memref<8x1xf32, #tpu.memory_space<vmem>>, vector<8x1xf32>
      tpu.vector_store %arg15[%c0_69, %c0_70], %96 {strides = array<i32>} : memref<8x1xf32, #tpu.memory_space<vmem>>, vector<8x1xf32>,
    } else {
    }
    %c0 = arith.constant 0 : index
    %c0_1 = arith.constant 0 : index
    %3 = vector.load %arg2[%c0, %c0_1] : memref<8x128xf32, #tpu.memory_space<vmem>>, vector<8x128xf32>
    %cst = arith.constant -2.000000e+00 : f32
    %4 = vector.broadcast %cst : f32 to vector<8x128xf32>
    %5 = arith.mulf %3, %4 : vector<8x128xf32>
    %c0_2 = arith.constant 0 : index
    %c0_3 = arith.constant 0 : index
    %6 = vector.load %arg5[%c0_2, %c0_3] : memref<128x128xf32, #tpu.memory_space<vmem>>, vector<128x128xf32>
    %cst_4 = arith.constant dense<0.000000e+00> : vector<8x128xf32>
    %7 = tpu.matmul %5, %6, %cst_4 {dimension_numbers = #tpu.dot_dimension_numbers<[1], [0], [0], [1], [0, 0, 1, 1], [], []>} : vector<8x128xf32>, vector<128x128xf32>, vector<8x128xf32> -> vector<8x128xf32>
    %c0_5 = arith.constant 0 : index
    %c0_6 = arith.constant 0 : index
    %8 = vector.load %arg3[%c0_5, %c0_6] : memref<8x1xf32, #tpu.memory_space<vmem>>, vector<8x1xf32>
    %c0_7 = arith.constant 0 : index
    %c0_8 = arith.constant 0 : index
    %9 = vector.load %arg6[%c0_7, %c0_8] : memref<1x128xf32, #tpu.memory_space<vmem>>, vector<1x128xf32>
    %10 = vector.broadcast %8 : vector<8x1xf32> to vector<8x128xf32>
    %11 = vector.broadcast %9 : vector<1x128xf32> to vector<8x128xf32>
    %12 = arith.addf %10, %11 : vector<8x128xf32>
    %13 = arith.addf %12, %7 : vector<8x128xf32>
    %cst_9 = arith.constant 9.99999996E-13 : f32
    %14 = vector.broadcast %cst_9 : f32 to vector<8x128xf32>
    %15 = arith.maximumf %13, %14 : vector<8x128xf32>
    %16 = math.sqrt %15 : vector<8x128xf32>
    %c0_10 = arith.constant 0 : index
    %c0_11 = arith.constant 0 : index
    %17 = vector.load %arg8[%c0_10, %c0_11] : memref<1x128xf32, #tpu.memory_space<vmem>>, vector<1x128xf32>
    %c0_12 = arith.constant 0 : index
    %c0_13 = arith.constant 0 : index
    %18 = vector.load %arg4[%c0_12, %c0_13] : memref<8x1xi32, #tpu.memory_space<vmem>>, vector<8x1xi32>
    %c0_14 = arith.constant 0 : index
    %c0_15 = arith.constant 0 : index
    %19 = vector.load %arg7[%c0_14, %c0_15] : memref<1x128xi32, #tpu.memory_space<vmem>>, vector<1x128xi32>
    %20 = vector.broadcast %18 : vector<8x1xi32> to vector<8x128xi32>
    %21 = vector.broadcast %19 : vector<1x128xi32> to vector<8x128xi32>
    %22 = arith.cmpi eq, %20, %21 : vector<8x128xi32>
    %23 = arith.extui %22 : vector<8x128xi1> to vector<8x128xi32>
    %24 = arith.sitofp %23 : vector<8x128xi32> to vector<8x128xf32>
    %25 = vector.broadcast %17 : vector<1x128xf32> to vector<8x128xf32>
    %26 = arith.mulf %24, %25 : vector<8x128xf32>
    %27 = vector.broadcast %17 : vector<1x128xf32> to vector<8x128xf32>
    %28 = arith.subf %27, %26 : vector<8x128xf32>
    %29 = arith.mulf %16, %26 : vector<8x128xf32>
    %30 = arith.mulf %16, %28 : vector<8x128xf32>
    %cst_16 = arith.constant 0.000000e+00 : f32
    %31 = vector.broadcast %cst_16 : f32 to vector<8x128xf32>
    %32 = arith.subf %31, %30 : vector<8x128xf32>
    %c0_17 = arith.constant 0 : index
    %c0_18 = arith.constant 0 : index
    %33 = vector.load %arg10[%c0_17, %c0_18] : memref<8x1xf32, #tpu.memory_space<vmem>>, vector<8x1xf32>
    %cst_19 = arith.constant dense<0xFF800000> : vector<8xf32>
    %34 = vector.multi_reduction <maximumf>, %29, %cst_19 [1] : vector<8x128xf32> to vector<8xf32>
    %35 = vector.shape_cast %34 : vector<8xf32> to vector<8x1xf32>
    %36 = arith.maximumf %33, %35 : vector<8x1xf32>
    %c0_20 = arith.constant 0 : index
    %c0_21 = arith.constant 0 : index
    %37 = vector.load %arg10[%c0_20, %c0_21] : memref<8x1xf32, #tpu.memory_space<vmem>>, vector<8x1xf32>
    %38 = arith.subf %37, %36 : vector<8x1xf32>
    %39 = math.exp %38 : vector<8x1xf32>
    %40 = vector.broadcast %36 : vector<8x1xf32> to vector<8x128xf32>
    %41 = arith.subf %29, %40 : vector<8x128xf32>
    %42 = math.exp %41 : vector<8x128xf32>
    %43 = arith.mulf %42, %26 : vector<8x128xf32>
    %c0_22 = arith.constant 0 : index
    %c0_23 = arith.constant 0 : index
    %44 = vector.load %arg11[%c0_22, %c0_23] : memref<8x1xf32, #tpu.memory_space<vmem>>, vector<8x1xf32>
    %45 = arith.mulf %39, %44 : vector<8x1xf32>
    %cst_24 = arith.constant dense<0.000000e+00> : vector<8xf32>
    %46 = vector.multi_reduction <add>, %43, %cst_24 [1] : vector<8x128xf32> to vector<8xf32>
    %47 = vector.shape_cast %46 : vector<8xf32> to vector<8x1xf32>
    %48 = arith.addf %45, %47 : vector<8x1xf32>
    %c0_25 = arith.constant 0 : index
    %c0_26 = arith.constant 0 : index
    %49 = vector.load %arg11[%c0_25, %c0_26] : memref<8x1xf32, #tpu.memory_space<vmem>>, vector<8x1xf32>
    tpu.vector_store %arg11[%c0_25, %c0_26], %48 {strides = array<i32>} : memref<8x1xf32, #tpu.memory_space<vmem>>, vector<8x1xf32>,
    %c0_27 = arith.constant 0 : index
    %c0_28 = arith.constant 0 : index
    %50 = vector.load %arg12[%c0_27, %c0_28] : memref<8x1xf32, #tpu.memory_space<vmem>>, vector<8x1xf32>
    %51 = arith.mulf %39, %50 : vector<8x1xf32>
    %52 = arith.mulf %29, %43 : vector<8x128xf32>
    %cst_29 = arith.constant dense<0.000000e+00> : vector<8xf32>
    %53 = vector.multi_reduction <add>, %52, %cst_29 [1] : vector<8x128xf32> to vector<8xf32>
    %54 = vector.shape_cast %53 : vector<8xf32> to vector<8x1xf32>
    %55 = arith.addf %51, %54 : vector<8x1xf32>
    %c0_30 = arith.constant 0 : index
    %c0_31 = arith.constant 0 : index
    %56 = vector.load %arg12[%c0_30, %c0_31] : memref<8x1xf32, #tpu.memory_space<vmem>>, vector<8x1xf32>
    tpu.vector_store %arg12[%c0_30, %c0_31], %55 {strides = array<i32>} : memref<8x1xf32, #tpu.memory_space<vmem>>, vector<8x1xf32>,
    %c0_32 = arith.constant 0 : index
    %c0_33 = arith.constant 0 : index
    %57 = vector.load %arg10[%c0_32, %c0_33] : memref<8x1xf32, #tpu.memory_space<vmem>>, vector<8x1xf32>
    tpu.vector_store %arg10[%c0_32, %c0_33], %36 {strides = array<i32>} : memref<8x1xf32, #tpu.memory_space<vmem>>, vector<8x1xf32>,
    %c0_34 = arith.constant 0 : index
    %c0_35 = arith.constant 0 : index
    %58 = vector.load %arg13[%c0_34, %c0_35] : memref<8x1xf32, #tpu.memory_space<vmem>>, vector<8x1xf32>
    %cst_36 = arith.constant dense<0xFF800000> : vector<8xf32>
    %59 = vector.multi_reduction <maximumf>, %32, %cst_36 [1] : vector<8x128xf32> to vector<8xf32>
    %60 = vector.shape_cast %59 : vector<8xf32> to vector<8x1xf32>
    %61 = arith.maximumf %58, %60 : vector<8x1xf32>
    %c0_37 = arith.constant 0 : index
    %c0_38 = arith.constant 0 : index
    %62 = vector.load %arg13[%c0_37, %c0_38] : memref<8x1xf32, #tpu.memory_space<vmem>>, vector<8x1xf32>
    %63 = arith.subf %62, %61 : vector<8x1xf32>
    %64 = math.exp %63 : vector<8x1xf32>
    %65 = vector.broadcast %61 : vector<8x1xf32> to vector<8x128xf32>
    %66 = arith.subf %32, %65 : vector<8x128xf32>
    %67 = math.exp %66 : vector<8x128xf32>
    %68 = arith.mulf %67, %28 : vector<8x128xf32>
    %c0_39 = arith.constant 0 : index
    %c0_40 = arith.constant 0 : index
    %69 = vector.load %arg14[%c0_39, %c0_40] : memref<8x1xf32, #tpu.memory_space<vmem>>, vector<8x1xf32>
    %70 = arith.mulf %64, %69 : vector<8x1xf32>
    %cst_41 = arith.constant dense<0.000000e+00> : vector<8xf32>
    %71 = vector.multi_reduction <add>, %68, %cst_41 [1] : vector<8x128xf32> to vector<8xf32>
    %72 = vector.shape_cast %71 : vector<8xf32> to vector<8x1xf32>
    %73 = arith.addf %70, %72 : vector<8x1xf32>
    %c0_42 = arith.constant 0 : index
    %c0_43 = arith.constant 0 : index
    %74 = vector.load %arg14[%c0_42, %c0_43] : memref<8x1xf32, #tpu.memory_space<vmem>>, vector<8x1xf32>
    tpu.vector_store %arg14[%c0_42, %c0_43], %73 {strides = array<i32>} : memref<8x1xf32, #tpu.memory_space<vmem>>, vector<8x1xf32>,
    %c0_44 = arith.constant 0 : index
    %c0_45 = arith.constant 0 : index
    %75 = vector.load %arg15[%c0_44, %c0_45] : memref<8x1xf32, #tpu.memory_space<vmem>>, vector<8x1xf32>
    %76 = arith.mulf %64, %75 : vector<8x1xf32>
    %77 = arith.mulf %30, %68 : vector<8x128xf32>
    %cst_46 = arith.constant dense<0.000000e+00> : vector<8xf32>
    %78 = vector.multi_reduction <add>, %77, %cst_46 [1] : vector<8x128xf32> to vector<8xf32>
    %79 = vector.shape_cast %78 : vector<8xf32> to vector<8x1xf32>
    %80 = arith.addf %76, %79 : vector<8x1xf32>
    %c0_47 = arith.constant 0 : index
    %c0_48 = arith.constant 0 : index
    %81 = vector.load %arg15[%c0_47, %c0_48] : memref<8x1xf32, #tpu.memory_space<vmem>>, vector<8x1xf32>
    tpu.vector_store %arg15[%c0_47, %c0_48], %80 {strides = array<i32>} : memref<8x1xf32, #tpu.memory_space<vmem>>, vector<8x1xf32>,
    %c0_49 = arith.constant 0 : index
    %c0_50 = arith.constant 0 : index
    %82 = vector.load %arg13[%c0_49, %c0_50] : memref<8x1xf32, #tpu.memory_space<vmem>>, vector<8x1xf32>
    tpu.vector_store %arg13[%c0_49, %c0_50], %61 {strides = array<i32>} : memref<8x1xf32, #tpu.memory_space<vmem>>, vector<8x1xf32>,
    %c0_i32_51 = arith.constant 0 : i32
    %83 = arith.cmpi eq, %arg1, %c0_i32_51 : i32
    %84 = arith.extui %83 : i1 to i32
    %c0_i32_52 = arith.constant 0 : i32
    %85 = arith.cmpi ne, %84, %c0_i32_52 : i32
    scf.if %85 {
      %c0_53 = arith.constant 0 : index
      %c0_54 = arith.constant 0 : index
      %86 = vector.load %arg12[%c0_53, %c0_54] : memref<8x1xf32, #tpu.memory_space<vmem>>, vector<8x1xf32>
      %c0_55 = arith.constant 0 : index
      %c0_56 = arith.constant 0 : index
      %87 = vector.load %arg11[%c0_55, %c0_56] : memref<8x1xf32, #tpu.memory_space<vmem>>, vector<8x1xf32>
      %cst_57 = arith.constant 9.99999997E-7 : f32
      %88 = vector.broadcast %cst_57 : f32 to vector<8x1xf32>
      %89 = arith.addf %87, %88 : vector<8x1xf32>
      %90 = arith.divf %86, %89 : vector<8x1xf32>
      %c0_58 = arith.constant 0 : index
      %c0_59 = arith.constant 0 : index
      %91 = vector.load %arg15[%c0_58, %c0_59] : memref<8x1xf32, #tpu.memory_space<vmem>>, vector<8x1xf32>
      %c0_60 = arith.constant 0 : index
      %c0_61 = arith.constant 0 : index
      %92 = vector.load %arg14[%c0_60, %c0_61] : memref<8x1xf32, #tpu.memory_space<vmem>>, vector<8x1xf32>
      %cst_62 = arith.constant 9.99999997E-7 : f32
      %93 = vector.broadcast %cst_62 : f32 to vector<8x1xf32>
      %94 = arith.addf %92, %93 : vector<8x1xf32>
      %95 = arith.divf %91, %94 : vector<8x1xf32>
      %96 = arith.subf %90, %95 : vector<8x1xf32>
      %cst_63 = arith.constant 0.000000e+00 : f32
      %97 = vector.broadcast %cst_63 : f32 to vector<8x1xf32>
      %98 = arith.maximumf %96, %97 : vector<8x1xf32>
      %99 = math.absf %96 : vector<8x1xf32>
      %cst_64 = arith.constant 0.000000e+00 : f32
      %100 = vector.broadcast %cst_64 : f32 to vector<8x1xf32>
      %101 = arith.subf %100, %99 : vector<8x1xf32>
      %102 = math.exp %101 : vector<8x1xf32>
      %103 = math.log1p %102 : vector<8x1xf32>
      %104 = arith.addf %98, %103 : vector<8x1xf32>
      %c0_65 = arith.constant 0 : index
      %c0_66 = arith.constant 0 : index
      %105 = vector.load %arg9[%c0_65, %c0_66] : memref<8x1xf32, #tpu.memory_space<vmem>>, vector<8x1xf32>
      tpu.vector_store %arg9[%c0_65, %c0_66], %104 {strides = array<i32>} : memref<8x1xf32, #tpu.memory_space<vmem>>, vector<8x1xf32>,
    } else {
    }
    return
  }
  func.func @transform_0(%arg0: i32, %arg1: i32) -> (i32, i32) {
    %c0_i32 = arith.constant 0 : i32
    %c0_i32_0 = arith.constant 0 : i32
    return %arg0, %c0_i32 : i32, i32
  }
  func.func @transform_1(%arg0: i32, %arg1: i32) -> (i32, i32) {
    %c0_i32 = arith.constant 0 : i32
    %c0_i32_0 = arith.constant 0 : i32
    return %arg0, %c0_i32 : i32, i32
  }
  func.func @transform_2(%arg0: i32, %arg1: i32) -> (i32, i32) {
    %c0_i32 = arith.constant 0 : i32
    %c0_i32_0 = arith.constant 0 : i32
    return %arg0, %c0_i32 : i32, i32
  }
  func.func @transform_3(%arg0: i32, %arg1: i32) -> (i32, i32) {
    %c0_i32 = arith.constant 0 : i32
    %c0_i32_0 = arith.constant 0 : i32
    return %c0_i32, %arg1 : i32, i32
  }
  func.func @transform_4(%arg0: i32, %arg1: i32) -> (i32, i32) {
    %c0_i32 = arith.constant 0 : i32
    %c0_i32_0 = arith.constant 0 : i32
    return %c0_i32, %arg1 : i32, i32
  }
  func.func @transform_5(%arg0: i32, %arg1: i32) -> (i32, i32) {
    %c0_i32 = arith.constant 0 : i32
    %c0_i32_0 = arith.constant 0 : i32
    return %c0_i32, %arg1 : i32, i32
  }
  func.func @transform_6(%arg0: i32, %arg1: i32) -> (i32, i32) {
    %c0_i32 = arith.constant 0 : i32
    %c0_i32_0 = arith.constant 0 : i32
    return %c0_i32, %arg1 : i32, i32
  }
  func.func @transform_7(%arg0: i32, %arg1: i32) -> (i32, i32) {
    %c0_i32 = arith.constant 0 : i32
    %c0_i32_0 = arith.constant 0 : i32
    return %arg0, %c0_i32 : i32, i32
  }
}

</mosaic_0001>

<llo_original>
// kernel: tpu_custom_call.1
$region0: #{tpu_custom_call.1}
  #allocation0 [shape = 'u32[]', space=smem, size = 0x4, offset = 0x4, fixed_abs, tag = 'smem constant byte address 0x4 - core index']
  #allocation1 [shape = 'u32[144,128]{1,0:T(1,128)}', space=vmem, size = 0x12000, scoped, tag = 'internal scratch']
  #allocation2 [shape = 'f32[8,1]{1,0:T(8,128)}', space=vmem, size = 0x1000, scoped, tag = 'scratch operand']
  #allocation3 [shape = 'f32[8,1]{1,0:T(8,128)}', space=vmem, size = 0x1000, scoped, tag = 'scratch operand']
  #allocation4 [shape = 'f32[8,1]{1,0:T(8,128)}', space=vmem, size = 0x1000, scoped, tag = 'scratch operand']
  #allocation5 [shape = 'f32[8,1]{1,0:T(8,128)}', space=vmem, size = 0x1000, scoped, tag = 'scratch operand']
  #allocation6 [shape = 'f32[8,1]{1,0:T(8,128)}', space=vmem, size = 0x1000, scoped, tag = 'scratch operand']
  #allocation7 [shape = 'f32[8,1]{1,0:T(8,128)}', space=vmem, size = 0x1000, scoped, tag = 'scratch operand']
  %s0 = inlined_call_operand.vmem [shape: f32[8,128], index: 0, kind: input, shape index: {}]
  %s1 = inlined_call_operand.vmem [shape: f32[8,1], index: 1, kind: input, shape index: {}]
  %s2 = inlined_call_operand.vmem [shape: s32[8,1], index: 2, kind: input, shape index: {}]
  %s3 = inlined_call_operand.hbm [shape: f32[128,128], index: 3, kind: input, shape index: {}]
  %s4 = inlined_call_operand.vmem [shape: f32[1,128], index: 4, kind: input, shape index: {}]
  %s5 = inlined_call_operand.vmem [shape: s32[1,128], index: 5, kind: input, shape index: {}]
  %s6 = inlined_call_operand.vmem [shape: f32[1,128], index: 6, kind: input, shape index: {}]
  %s7 = inlined_call_operand.vmem [shape: f32[8,1], index: 7, kind: output, shape index: {}]
  %s8 = sld [smem:[#allocation0]]
  $region50: #{tpu_custom_call.1} parent=0
    _
  %s10 = ssub.s32 1, %s8
  %s11 = scalar_select 0, %s10, %s8
  $region1: #{tpu_custom_call.1} parent=0
    #allocation8 [shape = 'u8[65536]{0}', space=vmem, size = 0x10000, scoped, tag = 'input window, operand 3, single buffered']
    #allocation9 [shape = 's32[1]{0}', space=sflag, size = 0x4, scoped, tag = 'scoped memory for tpu_custom_call.1']
    %12 = vsyncpa [#allocation9], 0
    // Predicated region
    $region2: #{tpu_custom_call.1} parent=1 // pred_check
      _
    $region3: #{tpu_custom_call.1} parent=1 // pred_check_branch
      %14 = sbr.rel (0) target = $region5
    $region4: #{tpu_custom_call.1} parent=1 // pred_region
      _
    $region5: #{tpu_custom_call.1} parent=1 // pred_fallthru
      _
    // Predicated region
    $region6: #{tpu_custom_call.1} parent=1 // pred_check
      _
    $region7: #{tpu_custom_call.1} parent=1 // pred_check_branch
      %16 = sbr.rel (0) target = $region9
    $region8: #{tpu_custom_call.1} parent=1 // pred_region
      _
    $region9: #{tpu_custom_call.1} parent=1 // pred_fallthru
      _
    // Predicated region
    $region10: #{tpu_custom_call.1} parent=1 // pred_check
      _
    $region11: #{tpu_custom_call.1} parent=1 // pred_check_branch
      %18 = sbr.rel (0) target = $region13
    $region12: #{tpu_custom_call.1} parent=1 // pred_region
      _
    $region13: #{tpu_custom_call.1} parent=1 // pred_fallthru
      _
    // Predicated region
    $region14: #{tpu_custom_call.1} parent=1 // pred_check
      _
    $region15: #{tpu_custom_call.1} parent=1 // pred_check_branch
      %20 = sbr.rel (0) target = $region17
    $region16: #{tpu_custom_call.1} parent=1 // pred_region
      %s22 = ssub.s32 2048, 2048
      %23 = vsyncadd [#allocation9], %s22
      %s24 = sshll.u32 [#allocation8], 4
      %s25 = int_to_ptr.vmem [resolvable:$true] %s24
      %30 = dma.hbm_to_vmem [thread:$0]  %s3, 2048, %s25, [#allocation9], 128, 128, 8
    $region17: #{tpu_custom_call.1} parent=1 // pred_fallthru
      _
    // Predicated region
    $region18: #{tpu_custom_call.1} parent=1 // pred_check
      _
    $region19: #{tpu_custom_call.1} parent=1 // pred_check_branch
      %32 = sbr.rel (0) target = $region21
    $region20: #{tpu_custom_call.1} parent=1 // pred_region
      _
    $region21: #{tpu_custom_call.1} parent=1 // pred_fallthru
      _
    // Predicated region
    $region22: #{tpu_custom_call.1} parent=1 // pred_check
      _
    $region23: #{tpu_custom_call.1} parent=1 // pred_check_branch
      %34 = sbr.rel (0) target = $region25
    $region24: #{tpu_custom_call.1} parent=1 // pred_region
      _
    $region25: #{tpu_custom_call.1} parent=1 // pred_fallthru
      _
    // Predicated region
    $region26: #{tpu_custom_call.1} parent=1 // pred_check
      _
    $region27: #{tpu_custom_call.1} parent=1 // pred_check_branch
      %36 = sbr.rel (0) target = $region29
    $region28: #{tpu_custom_call.1} parent=1 // pred_region
      _
    $region29: #{tpu_custom_call.1} parent=1 // pred_fallthru
      _
    // Predicated region
    $region30: #{tpu_custom_call.1} parent=1 // pred_check
      _
    $region31: #{tpu_custom_call.1} parent=1 // pred_check_branch
      %38 = sbr.rel (0) target = $region33
    $region32: #{tpu_custom_call.1} parent=1 // pred_region
      %39 = dma.done [#allocation9], 2048
    $region33: #{tpu_custom_call.1} parent=1 // pred_fallthru
      _
    %p40 = scmp.eq.s32.totalorder 0, 0
    // Predicated region
    $region34: #{tpu_custom_call.1} parent=1 // pred_check
      %p41 = pneg %p40
    $region35: #{tpu_custom_call.1} parent=1 // pred_check_branch
      %43 = sbr.rel (%p41) target = $region37
    $region36: #{tpu_custom_call.1} parent=1 // pred_region
      %vm44 = vcmask 7168
      %45 = vst.msk [vmem:[#allocation2] sm:$0xff] %vm44, 0.0
      %46 = vst.msk [vmem:[#allocation3] sm:$0xff] %vm44, 0.0
      %47 = vst.msk [vmem:[#allocation4] sm:$0xff] %vm44, 0.0
      %48 = vst.msk [vmem:[#allocation5] sm:$0xff] %vm44, 0.0
      %49 = vst.msk [vmem:[#allocation6] sm:$0xff] %vm44, 0.0
      %50 = vst.msk [vmem:[#allocation7] sm:$0xff] %vm44, 0.0
    $region37: #{tpu_custom_call.1} parent=1 // pred_fallthru
      _
    %v51 = vld [vmem:[%s0] sm:$0xff]
    %v52 = vmul.f32 %v51, -2.0
    %v53 = vld [vmem:[#allocation8] sm:$0xff]
    %v54 = vld [vmem:[#allocation8 + $0x8] sm:$0xff]
    %v55 = vld [vmem:[#allocation8 + $0x10] sm:$0xff]
    %v56 = vld [vmem:[#allocation8 + $0x18] sm:$0xff]
    %v57 = vld [vmem:[#allocation8 + $0x20] sm:$0xff]
    %v58 = vld [vmem:[#allocation8 + $0x28] sm:$0xff]
    %v59 = vld [vmem:[#allocation8 + $0x30] sm:$0xff]
    %v60 = vld [vmem:[#allocation8 + $0x38] sm:$0xff]
    %v61 = vld [vmem:[#allocation8 + $0x40] sm:$0xff]
    %v62 = vld [vmem:[#allocation8 + $0x48] sm:$0xff]
    %v63 = vld [vmem:[#allocation8 + $0x50] sm:$0xff]
    %v64 = vld [vmem:[#allocation8 + $0x58] sm:$0xff]
    %v65 = vld [vmem:[#allocation8 + $0x60] sm:$0xff]
    %v66 = vld [vmem:[#allocation8 + $0x68] sm:$0xff]
    %v67 = vld [vmem:[#allocation8 + $0x70] sm:$0xff]
    %v68 = vld [vmem:[#allocation8 + $0x78] sm:$0xff]
    %69 = vmatprep.subr.mxu0 0.0
    %70 = vmatpush1.msra.mxu0 %v68
    %71 = vmatprep.subr.mxu0 0.0
    %72 = vmatpush1.msra.mxu0 %v67
    %73 = vmatprep.subr.mxu0 0.0
    %74 = vmatpush1.msra.mxu0 %v66
    %75 = vmatprep.subr.mxu0 0.0
    %76 = vmatpush1.msra.mxu0 %v65
    %77 = vmatprep.subr.mxu0 0.0
    %78 = vmatpush1.msra.mxu0 %v64
    %79 = vmatprep.subr.mxu0 0.0
    %80 = vmatpush1.msra.mxu0 %v63
    %81 = vmatprep.subr.mxu0 0.0
    %82 = vmatpush1.msra.mxu0 %v62
    %83 = vmatprep.subr.mxu0 0.0
    %84 = vmatpush1.msra.mxu0 %v61
    %85 = vmatprep.subr.mxu0 0.0
    %86 = vmatpush1.msra.mxu0 %v60
    %87 = vmatprep.subr.mxu0 0.0
    %88 = vmatpush1.msra.mxu0 %v59
    %89 = vmatprep.subr.mxu0 0.0
    %90 = vmatpush1.msra.mxu0 %v58
    %91 = vmatprep.subr.mxu0 0.0
    %92 = vmatpush1.msra.mxu0 %v57
    %93 = vmatprep.subr.mxu0 0.0
    %94 = vmatpush1.msra.mxu0 %v56
    %95 = vmatprep.subr.mxu0 0.0
    %96 = vmatpush1.msra.mxu0 %v55
    %97 = vmatprep.subr.mxu0 0.0
    %98 = vmatpush1.msra.mxu0 %v54
    %99 = vmatprep.subr.mxu0 0.0
    %100 = vmatpush1.msra.mxu0 %v53
    %101 = vmatprep.subr.mxu0 0.0
    %102 = vmatpush2.msra.mxu0 0.0
    %103 = vmatprep.subr.mxu0 0.0
    %104 = vmatpush2.msra.mxu0 0.0
    %105 = vmatprep.subr.mxu0 0.0
    %106 = vmatpush2.msra.mxu0 0.0
    %107 = vmatprep.subr.mxu0 0.0
    %108 = vmatpush2.msra.mxu0 0.0
    %109 = vmatprep.subr.mxu0 0.0
    %110 = vmatpush2.msra.mxu0 0.0
    %111 = vmatprep.subr.mxu0 0.0
    %112 = vmatpush2.msra.mxu0 0.0
    %113 = vmatprep.subr.mxu0 0.0
    %114 = vmatpush2.msra.mxu0 0.0
    %115 = vmatprep.subr.mxu0 0.0
    %116 = vmatpush2.msra.mxu0 0.0
    %117 = vmatprep.subr.mxu0 0.0
    %118 = vmatpush2.msra.mxu0 0.0
    %119 = vmatprep.subr.mxu0 0.0
    %120 = vmatpush2.msra.mxu0 0.0
    %121 = vmatprep.subr.mxu0 0.0
    %122 = vmatpush2.msra.mxu0 0.0
    %123 = vmatprep.subr.mxu0 0.0
    %124 = vmatpush2.msra.mxu0 0.0
    %125 = vmatprep.subr.mxu0 0.0
    %126 = vmatpush2.msra.mxu0 0.0
    %127 = vmatprep.subr.mxu0 0.0
    %128 = vmatpush2.msra.mxu0 0.0
    %129 = vmatprep.subr.mxu0 0.0
    %130 = vmatpush2.msra.mxu0 0.0
    %131 = vmatprep.subr.mxu0 0.0
    %132 = vmatpush2.msra.mxu0 0.0
    %133 = vmatprep.mubr.f32.mxu0 0.0
    %134 = vmatmul.mubr.f32.gmra.mxu0 %v52
    %v135 = vpop.f32.mrf.mxu0
    %v136 = vadd.f32 0.0, %v135
    %v137 = vpop.f32.mrf.mxu0
    %138 = vdwg.mxu0
    %v139 = vld [vmem:[%s1] sm:$0xff]
    %v140 = vld [vmem:[%s4] sm:$0x1]
    %142 = vset.pattern.permute.xlu0 0
    %143 = vperm.xlu0 %142, %v139
    %v144 = vpop.permute.xlu0 %143
    %v147 = vlaneseq
    %v148 = vshrl.u32 %v147, 7
    %v149 = vsub.s32 0, %v148
    %v150 = vrot.slane %v140, %v149
    %v152 = vadd.f32 %v144, %v150
    %v153 = vadd.f32 %v152, %v136
    %v154 = vmax.f32 %v153, 1e-12
    %v155 = vrsqrt.pop %v154
    %v156 = vmul.f32 %v154, %v155
    %vm157 = vcmp.eq.f32.partialorder %v154, inf
    %v158 = vsel %vm157, %v154, %v156
    %vm159 = vcmp.eq.f32.partialorder %v154, 0.0
    %v160 = vand.u32 %v154, 2147483648
    %v161 = vsel %vm159, %v160, %v158
    %v162 = vld [vmem:[%s6] sm:$0x1]
    %v163 = vld [vmem:[%s2] sm:$0xff]
    %v164 = vld [vmem:[%s5] sm:$0x1]
    %165 = vset.pattern.permute.xlu0 0
    %166 = vperm.xlu0 %165, %v163
    %v167 = vpop.permute.xlu0 %166
    %v168 = vlaneseq
    %v169 = vshrl.u32 %v168, 7
    %v170 = vsub.s32 0, %v169
    %v171 = vrot.slane %v164, %v170
    %vm172 = vcmp.eq.s32.totalorder %v167, %v171
    %v173 = vsel %vm172, 1, 0
    %v174 = vcvt.s32.f32 %v173
    %v176 = vlaneseq
    %v177 = vshrl.u32 %v176, 7
    %v178 = vsub.s32 0, %v177
    %v179 = vrot.slane %v162, %v178
    %v181 = vmul.f32 %v174, %v179
    %v182 = vsub.f32 %v179, %v181
    %v183 = vmul.f32 %v161, %v181
    %v184 = vmul.f32 %v161, %v182
    %v185 = vsub.f32 0.0, %v184
    %v186 = vld [vmem:[#allocation2] sm:$0xff]
    %187 = vmax.xlane.f32.xlu0 %v183
    %v188 = vpop.xlane.xlu0 %187
    %v189 = vmax.f32 %v186, %v188
    %v190 = vsub.f32 %v186, %v189
    %v191 = vmul.f32 %v190, 1.442695
    %v192 = vpow.pop %v191
    %194 = vset.pattern.permute.xlu0 0
    %195 = vperm.xlu0 %194, %v189
    %v196 = vpop.permute.xlu0 %195
    %v198 = vsub.f32 %v183, %v196
    %v199 = vmul.f32 %v198, 1.442695
    %v200 = vpow.pop %v199
    %v201 = vmul.f32 %v200, %v181
    %v202 = vld [vmem:[#allocation3] sm:$0xff]
    %v203 = vmul.f32 %v192, %v202
    %204 = vadd.xlane.f32.xlu0 %v201
    %v205 = vpop.xlane.xlu0 %204
    %v206 = vadd.f32 %v203, %v205
    %vm207 = vcmask 7168
    %208 = vst.msk [vmem:[#allocation3] sm:$0xff] %vm207, %v206
    %v209 = vld [vmem:[#allocation4] sm:$0xff]
    %v210 = vmul.f32 %v192, %v209
    %v211 = vmul.f32 %v183, %v201
    %212 = vadd.xlane.f32.xlu0 %v211
    %v213 = vpop.xlane.xlu0 %212
    %v214 = vadd.f32 %v210, %v213
    %215 = vst.msk [vmem:[#allocation4] sm:$0xff] %vm207, %v214
    %216 = vst.msk [vmem:[#allocation2] sm:$0xff] %vm207, %v189
    %v217 = vld [vmem:[#allocation5] sm:$0xff]
    %218 = vmax.xlane.f32.xlu0 %v185
    %v219 = vpop.xlane.xlu0 %218
    %v220 = vmax.f32 %v217, %v219
    %v221 = vsub.f32 %v217, %v220
    %v222 = vmul.f32 %v221, 1.442695
    %v223 = vpow.pop %v222
    %225 = vset.pattern.permute.xlu0 0
    %226 = vperm.xlu0 %225, %v220
    %v227 = vpop.permute.xlu0 %226
    %v229 = vsub.f32 %v185, %v227
    %v230 = vmul.f32 %v229, 1.442695
    %v231 = vpow.pop %v230
    %v232 = vmul.f32 %v231, %v182
    %v233 = vld [vmem:[#allocation6] sm:$0xff]
    %v234 = vmul.f32 %v223, %v233
    %235 = vadd.xlane.f32.xlu0 %v232
    %v236 = vpop.xlane.xlu0 %235
    %v237 = vadd.f32 %v234, %v236
    %238 = vst.msk [vmem:[#allocation6] sm:$0xff] %vm207, %v237
    %v239 = vld [vmem:[#allocation7] sm:$0xff]
    %v240 = vmul.f32 %v223, %v239
    %v241 = vmul.f32 %v184, %v232
    %242 = vadd.xlane.f32.xlu0 %v241
    %v243 = vpop.xlane.xlu0 %242
    %v244 = vadd.f32 %v240, %v243
    %245 = vst.msk [vmem:[#allocation7] sm:$0xff] %vm207, %v244
    %246 = vst.msk [vmem:[#allocation5] sm:$0xff] %vm207, %v220
    // Predicated region
    $region38: #{tpu_custom_call.1} parent=1 // pred_check
      %p247 = pneg %p40
    $region39: #{tpu_custom_call.1} parent=1 // pred_check_branch
      %249 = sbr.rel (%p247) target = $region41
    $region40: #{tpu_custom_call.1} parent=1 // pred_region
      %v250 = vld [vmem:[#allocation4] sm:$0xff]
      %v251 = vld [vmem:[#allocation3] sm:$0xff]
      %v252 = vadd.f32 %v251, 1e-06
      %v253 = vrcp.pop %v252
      %v254 = vmul.f32 %v250, %v253
      %v255 = vld [vmem:[#allocation7] sm:$0xff]
      %v256 = vld [vmem:[#allocation6] sm:$0xff]
      %v257 = vadd.f32 %v256, 1e-06
      %v258 = vrcp.pop %v257
      %v259 = vmul.f32 %v255, %v258
      %v260 = vsub.f32 %v254, %v259
      %v261 = vmax.f32 %v260, 0.0
      %v262 = vand.u32 2147483647, %v260
      %v263 = vsub.f32 0.0, %v262
      %v264 = vmul.f32 %v263, 1.442695
      %v265 = vpow.pop %v264
      %v266 = vadd.f32 %v265, 1.0
      %v267 = vlog2.pop %v266
      %v268 = vmul.f32 %v267, 0.6931472
      %v269 = vmul.f32 -0.5, %v265
      %v270 = vadd.f32 %v269, 1.0
      %v271 = vmul.f32 %v270, %v265
      %v272 = vand.u32 2147483647, %v265
      %vm273 = vcmp.lt.f32.partialorder %v272, 0.0004427343
      %v274 = vsel %vm273, %v271, %v268
      %v275 = vadd.f32 %v261, %v274
      %276 = vst.msk [vmem:[%s7] sm:$0xff] %vm207, %v275
    $region41: #{tpu_custom_call.1} parent=1 // pred_fallthru
      _
    // Predicated region
    $region42: #{tpu_custom_call.1} parent=1 // pred_check
      _
    $region43: #{tpu_custom_call.1} parent=1 // pred_check_branch
      %278 = sbr.rel (0) target = $region45
    $region44: #{tpu_custom_call.1} parent=1 // pred_region
      _
    $region45: #{tpu_custom_call.1} parent=1 // pred_fallthru
      _
    // Predicated region
    $region46: #{tpu_custom_call.1} parent=1 // pred_check
      _
    $region47: #{tpu_custom_call.1} parent=1 // pred_check_branch
      %280 = sbr.rel (0) target = $region49
    $region48: #{tpu_custom_call.1} parent=1 // pred_region
      _
    $region49: #{tpu_custom_call.1} parent=1 // pred_fallthru
      _
    %281 = vsyncpa [#allocation9], 1

</llo_original>
